<compile_context>
chip_gen: v7x
topology: tpu7x:2x2x1
jax: 0.10.0
libtpu: 0.0.40
codegen_flags: <defaults>
</compile_context>

<pallas_src>
import functools
import math

import jax
import jax.numpy as jnp
from jax import lax
from jax.experimental import pallas as pl
from jax.experimental.pallas import tpu as pltpu

LMBDA = 0.001
THRES = 0.999
EPS = 1e-12
_NAT = 1.0 / math.log(2.0)
_CDF_C = (2.0 / math.pi) ** 0.5


# --------------------------------------------------------------------------- #
# Kernel
# --------------------------------------------------------------------------- #
def _hybrid_loss_kernel(flags_ref,                       # scalar prefetch (SMEM)
                        inp_ref, tgt_ref, pmean_ref, plogvar_ref,
                        x0_ref, xt_ref, sched_ref,       # inputs
                        out_ref,                         # output
                        mse_acc, kl_acc, nll_acc,        # scratch [TB, 128] f32
                        *, D):
    i = pl.program_id(0)
    j = pl.program_id(1)
    nj = pl.num_programs(1)

    @pl.when(j == 0)
    def _():
        mse_acc[...] = jnp.zeros_like(mse_acc)
        kl_acc[...] = jnp.zeros_like(kl_acc)
        nll_acc[...] = jnp.zeros_like(nll_acc)

    f32 = jnp.float32
    x0 = x0_ref[...].astype(f32)
    xt = xt_ref[...].astype(f32)
    pmean = pmean_ref[...].astype(f32)     # detached pred mean (stop_gradient in wrapper)
    plogvar = plogvar_ref[...].astype(f32)
    sched = sched_ref[...]                 # [TB, 128] packed per-row scalars

    coef1 = sched[:, 0:1][..., None]       # posterior_mean_coef1[t]
    coef2 = sched[:, 1:2][..., None]       # posterior_mean_coef2[t]
    exp_qlv = sched[:, 3:4][..., None]     # exp(posterior_log_variance[t])

    # One exp serves both KL and decoder NLL:
    #   inv_stdv = exp(-0.5*plogvar);  exp(-plogvar) = inv_stdv**2
    # (fine for clipped schedules; extreme |plogvar| > ~87 would need a clamp)
    inv_stdv = jnp.exp(-0.5 * plogvar)
    inv_var = inv_stdv * inv_stdv

    # ---- normal_kl elementwise core (row constants folded in at finalize) ----
    q_mean = coef1 * x0 + coef2 * xt
    dqp = q_mean - pmean
    kl_elem = plogvar + (exp_qlv + dqp * dqp) * inv_var
    kl_acc[...] += jnp.sum(kl_elem, axis=1)            # [TB, TS, 128] -> [TB, 128]

    # ---- simple MSE ----
    dmse = inp_ref[...].astype(f32) - tgt_ref[...].astype(f32)
    mse_acc[...] += jnp.sum(dmse * dmse, axis=1)

    # ---- decoder NLL: only if this batch block contains a t == 0 sample ----
    @pl.when(flags_ref[i] != 0)
    def _():
        centered = x0 - pmean

        def acdf(v):
            return 0.5 * (1.0 + jnp.tanh(_CDF_C * (v + 0.044715 * v * v * v)))

        cdf_plus = acdf(inv_stdv * (centered + 1.0 / 255.0))
        cdf_min = acdf(inv_stdv * (centered - 1.0 / 255.0))
        sel = jnp.where(x0 < -THRES, cdf_plus,
                        jnp.where(x0 > THRES, 1.0 - cdf_min, cdf_plus - cdf_min))
        neg_logp = -jnp.log(jnp.maximum(sel, EPS))
        nll_acc[...] += jnp.sum(neg_logp, axis=1)

    # ---- finalize: one XLU lane-reduce + lane packing per batch block ----
    @pl.when(j == nj - 1)
    def _():
        def lane_sum(a):                                # [TB, 128] -> [TB, 1]
            return jnp.sum(a, axis=-1, keepdims=True)

        mse_sum = lane_sum(mse_acc[...])
        kl_sum = lane_sum(kl_acc[...]) - sched[:, 5:6]    # subtract pad contribution
        nll_sum = lane_sum(nll_acc[...]) - sched[:, 6:7]  # subtract pad contribution
        qlv = sched[:, 2:3]
        tz = sched[:, 4:5]
        # 0.5*(sum(plogvar + exp(qlv-plogvar) + dqp^2 exp(-plogvar)) + D*(-1-qlv))
        kl_row = 0.5 * (kl_sum - D * (1.0 + qlv)) * (_NAT / D)
        nll_row = nll_sum * (_NAT / D)
        vlb_row = jnp.where(tz > 0.5, nll_row, kl_row)

        lane = lax.broadcasted_iota(jnp.int32, out_ref.shape, 1)
        out_ref[...] = jnp.where(lane == 0, mse_sum,
                                 jnp.where(lane == 1, vlb_row, 0.0))


# --------------------------------------------------------------------------- #
# Schedule (DiscreteGaussianSchedule, linear betas) posterior buffers
# --------------------------------------------------------------------------- #
def make_schedule(num_steps: int, beta_start: float = 1e-4, beta_end: float = 0.02):
    betas = jnp.linspace(beta_start, beta_end, num_steps, dtype=jnp.float32)
    alphas = 1.0 - betas
    alphas_cumprod = jnp.cumprod(alphas)
    alphas_cumprod_prev = jnp.concatenate(
        [jnp.ones((1,), jnp.float32), alphas_cumprod[:-1]])
    posterior_variance = betas * (1.0 - alphas_cumprod_prev) / (1.0 - alphas_cumprod)
    posterior_log_variance_clipped = jnp.log(
        jnp.concatenate([posterior_variance[1:2], posterior_variance[1:]]))
    coef1 = betas * jnp.sqrt(alphas_cumprod_prev) / (1.0 - alphas_cumprod)
    coef2 = (1.0 - alphas_cumprod_prev) * jnp.sqrt(alphas) / (1.0 - alphas_cumprod)
    return coef1, coef2, posterior_log_variance_clipped


# --------------------------------------------------------------------------- #
# Tiling helpers
# --------------------------------------------------------------------------- #
def _vmem_plan():
    """Generation-aware VMEM plan: (vmem_limit_bytes, input_stream_budget)."""
    cap = 64 * 1024 * 1024                      # conservative default (v7x per-TC)
    try:
        info = pltpu.get_tpu_info()
        cap = int(getattr(info, "vmem_capacity_bytes", cap)) or cap
    except Exception:
        pass
    # 128 MiB parts (v5e/v6e) -> 64 MiB scoped limit; 64 MiB parts (v7x) -> 48 MiB.
    vmem_limit = min(64 * 1024 * 1024, (cap * 3) // 4)
    # Spend 1/3 on the 6 double-buffered input streams; leave the rest for the
    # compiler-materialized f32 elementwise temporaries + scratch.
    return vmem_limit, vmem_limit // 3


def _pick_tb(B):
    """Batch tile: keep >= 2 batch blocks when B >= 16 (v7x dual-TC), TB | B,
    and TB a multiple of 8 (or == B) so the 2-D [B,128] sched/out blocks stay
    layout-legal."""
    if B >= 16 and B % 8 == 0:
        for tb in (64, 32, 16, 8):
            if tb <= B // 2 and B % tb == 0:
                return tb
    return B


def _pick_ts(S, tb, sum_itemsize, input_budget, sub):
    """Feature tile (in 128-lane rows): multiple of the sublane tile, divides S
    when possible (no padding), sized to the input VMEM budget."""
    ts_cap = input_budget // (2 * tb * 128 * max(sum_itemsize, 1))   # 2 = double buffer
    ts_cap = max(sub, (ts_cap // sub) * sub)
    if S <= ts_cap:
        return S, 0                       # single feature block (block == full dim)
    for ts in range(ts_cap, sub - 1, -sub):
        if S % ts == 0:
            return ts, 0
    # Rare fallback: no suitable divisor -> pad S (zeros; corrected analytically).
    ts = ts_cap
    s_extra = (-(-S // ts)) * ts - S
    return ts, s_extra


# --------------------------------------------------------------------------- #
# Wrapper
# --------------------------------------------------------------------------- #
def diffusion_hybrid_loss(inp, tgt, mean, log_variance, x0, xt, t, schedule,
                          *, lmbda=LMBDA):
    B = inp.shape[0]
    D = math.prod(inp.shape[1:])
    inputs = (inp, tgt, mean, log_variance, x0, xt)

    sum_itemsize = sum(jnp.dtype(a.dtype).itemsize for a in inputs)
    sub = max(8, max(32 // jnp.dtype(a.dtype).itemsize for a in inputs))

    vmem_limit, input_budget = _vmem_plan()
    TB = _pick_tb(B)
    S = -(-D // 128)
    TS, s_extra = _pick_ts(S, TB, sum_itemsize, input_budget, sub)
    S_tot = S + s_extra
    n_pad = S_tot * 128 - D                 # zero-padded elements per row (often 0)

    # mean.detach() in the reference module: stop-gradient (forward no-op).
    mean = lax.stop_gradient(mean)
    # TODO(synk): backward would need a custom_vjp around this fused loss;
    # only the forward value is implemented here.

    def prep(a):
        # [B, C, H, W] -> [B, S_tot, 128]; pure bitcast when n_pad == 0.
        a = a.reshape(B, D)
        if n_pad:
            a = jnp.pad(a, ((0, 0), (0, n_pad)))
        return a.reshape(B, S_tot, 128)

    # Per-row schedule scalars + analytic pad corrections, lane-packed.
    coef1, coef2, post_log_var = schedule
    c1 = coef1[t].astype(jnp.float32)
    c2 = coef2[t].astype(jnp.float32)
    qlv = post_log_var[t].astype(jnp.float32)
    exp_qlv = jnp.exp(qlv)
    tz = (t == 0).astype(jnp.float32)
    if n_pad:
        inv255 = jnp.float32(1.0 / 255.0)

        def acdf(v):
            return 0.5 * (1.0 + jnp.tanh(jnp.float32(_CDF_C) *
                                         (v + 0.044715 * v * v * v)))

        pad_nll = -jnp.log(jnp.maximum(acdf(inv255) - acdf(-inv255),
                                       jnp.float32(EPS)))
        kl_corr = n_pad * exp_qlv                                    # [B]
        nll_corr = jnp.zeros((B,), jnp.float32) + n_pad * pad_nll    # [B]
    else:
        kl_corr = jnp.zeros((B,), jnp.float32)
        nll_corr = jnp.zeros((B,), jnp.float32)
    sched = jnp.stack([c1, c2, qlv, exp_qlv, tz, kl_corr, nll_corr], axis=-1)
    sched = jnp.pad(sched, ((0, 0), (0, 128 - sched.shape[1])))      # [B, 128]

    # Per-batch-block flag: does this block contain any t == 0 sample?
    flags = (t == 0).reshape(B // TB, TB).any(axis=-1).astype(jnp.int32)

    grid = (B // TB, S_tot // TS)
    big_spec = pl.BlockSpec((TB, TS, 128), lambda i, j, flags: (i, j, 0))
    sched_spec = pl.BlockSpec((TB, 128), lambda i, j, flags: (i, 0))
    out_spec = pl.BlockSpec((TB, 128), lambda i, j, flags: (i, 0))

    kernel = functools.partial(_hybrid_loss_kernel, D=D)

    cost = pl.CostEstimate(
        flops=int(40 * B * S_tot * 128),
        transcendentals=int(4 * B * S_tot * 128),
        bytes_accessed=int(B * S_tot * 128 * sum_itemsize + 2 * B * 128 * 4),
    )

    parts = pl.pallas_call(
        kernel,
        out_shape=jax.ShapeDtypeStruct((B, 128), jnp.float32),
        grid_spec=pltpu.PrefetchScalarGridSpec(
            num_scalar_prefetch=1,
            grid=grid,
            in_specs=[big_spec] * 6 + [sched_spec],
            out_specs=out_spec,
            scratch_shapes=[pltpu.VMEM((TB, 128), jnp.float32)] * 3,
        ),
        compiler_params=pltpu.CompilerParams(
            dimension_semantics=("parallel", "arbitrary"),
            vmem_limit_bytes=int(vmem_limit),
        ),
        cost_estimate=cost,
    )(flags, *(prep(a) for a in inputs), sched)

    mse = jnp.sum(parts[:, 0]) / (B * D)
    vlb = jnp.mean(parts[:, 1])
    return mse + lmbda * vlb


# --------------------------------------------------------------------------- #
# Pure-JAX reference (transcription of the PyTorch DiffusionHybridLoss forward)
# --------------------------------------------------------------------------- #
def _reference_loss(inp, tgt, mean, log_variance, x0, xt, t, schedule, lmbda=LMBDA):
    coef1, coef2, post_log_var = schedule
    B = inp.shape[0]
    exp_shape = (B,) + (1,) * (inp.ndim - 1)
    c1 = coef1[t].reshape(exp_shape)
    c2 = coef2[t].reshape(exp_shape)
    qlv = jnp.broadcast_to(post_log_var[t].reshape(exp_shape), x0.shape)
    q_mean = c1 * x0 + c2 * xt
    kl = 0.5 * (-1.0 + log_variance - qlv + jnp.exp(qlv - log_variance)
                + (q_mean - mean) ** 2 * jnp.exp(-log_variance))
    kl = kl.reshape(B, -1).mean(-1) * _NAT
    centered = x0 - mean
    inv_stdv = jnp.exp(-0.5 * log_variance)

    def acdf(v):
        return 0.5 * (1.0 + jnp.tanh(_CDF_C * (v + 0.044715 * v ** 3)))

    cdf_plus = acdf(inv_stdv * (centered + 1.0 / 255.0))
    cdf_min = acdf(inv_stdv * (centered - 1.0 / 255.0))
    log_probs = jnp.where(
        x0 < -THRES, jnp.log(jnp.maximum(cdf_plus, EPS)),
        jnp.where(x0 > THRES, jnp.log(jnp.maximum(1.0 - cdf_min, EPS)),
                  jnp.log(jnp.maximum(cdf_plus - cdf_min, EPS))))
    nll = (-log_probs).reshape(B, -1).mean(-1) * _NAT
    vlb = jnp.where(t == 0, nll, kl).mean()
    mse = jnp.mean((inp - tgt) ** 2)
    return mse + lmbda * vlb


if __name__ == "__main__":
    B, C, H, W = 2, 4, 16, 16
    T = 8

    key = jax.random.PRNGKey(0)
    ks = jax.random.split(key, 7)
    inp = jax.random.normal(ks[0], (B, C, H, W), jnp.float32)            # prediction
    tgt = jax.random.normal(ks[1], (B, C, H, W), jnp.float32)            # target noise
    x0 = jnp.tanh(jax.random.normal(ks[2], (B, C, H, W), jnp.float32))   # data in [-1, 1]
    xt = jax.random.normal(ks[3], (B, C, H, W), jnp.float32)             # noised sample
    mean = 0.1 * jax.random.normal(ks[4], (B, C, H, W), jnp.float32)     # pred posterior mean
    log_variance = 0.1 * jax.random.normal(ks[5], (B, C, H, W), jnp.float32) - 2.0
    t = jax.random.randint(ks[6], (B,), 0, T)
    t = t.at[0].set(0)   # exercise the decoder-NLL (t == 0) branch

    schedule = make_schedule(T)
    loss_fn = jax.jit(diffusion_hybrid_loss)

    # 1) t == 0 present -> decoder-NLL branch active.
    loss = jax.block_until_ready(loss_fn(inp, tgt, mean, log_variance, x0, xt, t, schedule))
    ref = jax.block_until_ready(_reference_loss(inp, tgt, mean, log_variance, x0, xt, t, schedule))
    assert jnp.allclose(loss, ref, rtol=2e-4, atol=1e-5), (float(loss), float(ref))

    # 2) no t == 0 -> decoder-NLL branch gated off by the scalar-prefetch flag.
    t2 = jnp.clip(t, 1, T - 1)
    loss2 = jax.block_until_ready(loss_fn(inp, tgt, mean, log_variance, x0, xt, t2, schedule))
    ref2 = jax.block_until_ready(_reference_loss(inp, tgt, mean, log_variance, x0, xt, t2, schedule))
    assert jnp.allclose(loss2, ref2, rtol=2e-4, atol=1e-5), (float(loss2), float(ref2))

    # 3) D not a multiple of 128 -> zero-pad path + analytic finalize correction.
    Cp, Hp, Wp = 3, 10, 10
    kp = jax.random.split(jax.random.PRNGKey(1), 6)
    inp_p = jax.random.normal(kp[0], (B, Cp, Hp, Wp), jnp.float32)
    tgt_p = jax.random.normal(kp[1], (B, Cp, Hp, Wp), jnp.float32)
    x0_p = jnp.tanh(jax.random.normal(kp[2], (B, Cp, Hp, Wp), jnp.float32))
    xt_p = jax.random.normal(kp[3], (B, Cp, Hp, Wp), jnp.float32)
    mean_p = 0.1 * jax.random.normal(kp[4], (B, Cp, Hp, Wp), jnp.float32)
    logv_p = 0.1 * jax.random.normal(kp[5], (B, Cp, Hp, Wp), jnp.float32) - 2.0
    loss3 = jax.block_until_ready(loss_fn(inp_p, tgt_p, mean_p, logv_p, x0_p, xt_p, t, schedule))
    ref3 = jax.block_until_ready(_reference_loss(inp_p, tgt_p, mean_p, logv_p, x0_p, xt_p, t, schedule))
    assert jnp.allclose(loss3, ref3, rtol=2e-4, atol=1e-5), (float(loss3), float(ref3))

    print("KERNEL_OK")
</pallas_src>

<mosaic_0001>
module attributes {stable_mosaic.version = 11 : i64} {
  func.func @_hybrid_loss_kernel(%arg0: i32, %arg1: i32, %arg2: memref<1xi32, #tpu.memory_space<smem>>, %arg3: memref<2x8x128xf32, #tpu.memory_space<vmem>>, %arg4: memref<2x8x128xf32, #tpu.memory_space<vmem>>, %arg5: memref<2x8x128xf32, #tpu.memory_space<vmem>>, %arg6: memref<2x8x128xf32, #tpu.memory_space<vmem>>, %arg7: memref<2x8x128xf32, #tpu.memory_space<vmem>>, %arg8: memref<2x8x128xf32, #tpu.memory_space<vmem>>, %arg9: memref<2x128xf32, #tpu.memory_space<vmem>>, %arg10: memref<2x128xf32, #tpu.memory_space<vmem>>, %arg11: memref<2x128xf32, #tpu.memory_space<vmem>>, %arg12: memref<2x128xf32, #tpu.memory_space<vmem>>, %arg13: memref<2x128xf32, #tpu.memory_space<vmem>>) attributes {dimension_semantics = [#tpu.dimension_semantics<parallel>, #tpu.dimension_semantics<arbitrary>], iteration_bounds = array<i64: 1, 1>, scalar_prefetch = 1 : i64, scratch_operands = 3 : i64, tpu.core_type = #tpu.core_type<tc>, window_params = [{transform_indices = @transform_0, window_bounds = array<i64: 2, 8, 128>}, {transform_indices = @transform_1, window_bounds = array<i64: 2, 8, 128>}, {transform_indices = @transform_2, window_bounds = array<i64: 2, 8, 128>}, {transform_indices = @transform_3, window_bounds = array<i64: 2, 8, 128>}, {transform_indices = @transform_4, window_bounds = array<i64: 2, 8, 128>}, {transform_indices = @transform_5, window_bounds = array<i64: 2, 8, 128>}, {transform_indices = @transform_6, window_bounds = array<i64: 2, 128>}, {transform_indices = @transform_7, window_bounds = array<i64: 2, 128>}]} {
    %c0_i32 = arith.constant 0 : i32
    %0 = arith.cmpi eq, %arg1, %c0_i32 : i32
    %1 = arith.extui %0 : i1 to i32
    %c0_i32_0 = arith.constant 0 : i32
    %2 = arith.cmpi ne, %1, %c0_i32_0 : i32
    scf.if %2 {
      %cst_34 = arith.constant 0.000000e+00 : f32
      %49 = vector.broadcast %cst_34 : f32 to vector<2x128xf32>
      %c0_35 = arith.constant 0 : index
      %c0_36 = arith.constant 0 : index
      %50 = vector.load %arg11[%c0_35, %c0_36] : memref<2x128xf32, #tpu.memory_space<vmem>>, vector<2x128xf32>
      tpu.vector_store %arg11[%c0_35, %c0_36], %49 {strides = array<i32>} : memref<2x128xf32, #tpu.memory_space<vmem>>, vector<2x128xf32>,
      %cst_37 = arith.constant 0.000000e+00 : f32
      %51 = vector.broadcast %cst_37 : f32 to vector<2x128xf32>
      %c0_38 = arith.constant 0 : index
      %c0_39 = arith.constant 0 : index
      %52 = vector.load %arg12[%c0_38, %c0_39] : memref<2x128xf32, #tpu.memory_space<vmem>>, vector<2x128xf32>
      tpu.vector_store %arg12[%c0_38, %c0_39], %51 {strides = array<i32>} : memref<2x128xf32, #tpu.memory_space<vmem>>, vector<2x128xf32>,
      %cst_40 = arith.constant 0.000000e+00 : f32
      %53 = vector.broadcast %cst_40 : f32 to vector<2x128xf32>
      %c0_41 = arith.constant 0 : index
      %c0_42 = arith.constant 0 : index
      %54 = vector.load %arg13[%c0_41, %c0_42] : memref<2x128xf32, #tpu.memory_space<vmem>>, vector<2x128xf32>
      tpu.vector_store %arg13[%c0_41, %c0_42], %53 {strides = array<i32>} : memref<2x128xf32, #tpu.memory_space<vmem>>, vector<2x128xf32>,
    } else {
    }
    %c0 = arith.constant 0 : index
    %c0_1 = arith.constant 0 : index
    %c0_2 = arith.constant 0 : index
    %3 = vector.load %arg7[%c0, %c0_1, %c0_2] : memref<2x8x128xf32, #tpu.memory_space<vmem>>, vector<2x8x128xf32>
    %c0_3 = arith.constant 0 : index
    %c0_4 = arith.constant 0 : index
    %c0_5 = arith.constant 0 : index
    %4 = vector.load %arg8[%c0_3, %c0_4, %c0_5] : memref<2x8x128xf32, #tpu.memory_space<vmem>>, vector<2x8x128xf32>
    %c0_6 = arith.constant 0 : index
    %c0_7 = arith.constant 0 : index
    %c0_8 = arith.constant 0 : index
    %5 = vector.load %arg5[%c0_6, %c0_7, %c0_8] : memref<2x8x128xf32, #tpu.memory_space<vmem>>, vector<2x8x128xf32>
    %c0_9 = arith.constant 0 : index
    %c0_10 = arith.constant 0 : index
    %c0_11 = arith.constant 0 : index
    %6 = vector.load %arg6[%c0_9, %c0_10, %c0_11] : memref<2x8x128xf32, #tpu.memory_space<vmem>>, vector<2x8x128xf32>
    %c0_12 = arith.constant 0 : index
    %c0_13 = arith.constant 0 : index
    %7 = vector.load %arg9[%c0_12, %c0_13] : memref<2x128xf32, #tpu.memory_space<vmem>>, vector<2x128xf32>
    %8 = vector.extract_strided_slice %7 {offsets = [0, 0], sizes = [2, 1], strides = [1, 1]} : vector<2x128xf32> to vector<2x1xf32>
    %9 = vector.shape_cast %8 : vector<2x1xf32> to vector<2x1x1xf32>
    %10 = vector.extract_strided_slice %7 {offsets = [0, 1], sizes = [2, 1], strides = [1, 1]} : vector<2x128xf32> to vector<2x1xf32>
    %11 = vector.shape_cast %10 : vector<2x1xf32> to vector<2x1x1xf32>
    %12 = vector.extract_strided_slice %7 {offsets = [0, 3], sizes = [2, 1], strides = [1, 1]} : vector<2x128xf32> to vector<2x1xf32>
    %13 = vector.shape_cast %12 : vector<2x1xf32> to vector<2x1x1xf32>
    %cst = arith.constant -5.000000e-01 : f32
    %14 = vector.broadcast %cst : f32 to vector<2x8x128xf32>
    %15 = arith.mulf %14, %6 : vector<2x8x128xf32>
    %16 = math.exp %15 : vector<2x8x128xf32>
    %17 = arith.mulf %16, %16 : vector<2x8x128xf32>
    %18 = vector.broadcast %9 : vector<2x1x1xf32> to vector<2x8x128xf32>
    %19 = arith.mulf %18, %3 : vector<2x8x128xf32>
    %20 = vector.broadcast %11 : vector<2x1x1xf32> to vector<2x8x128xf32>
    %21 = arith.mulf %20, %4 : vector<2x8x128xf32>
    %22 = arith.addf %19, %21 : vector<2x8x128xf32>
    %23 = arith.subf %22, %5 : vector<2x8x128xf32>
    %24 = arith.mulf %23, %23 : vector<2x8x128xf32>
    %25 = vector.broadcast %13 : vector<2x1x1xf32> to vector<2x8x128xf32>
    %26 = arith.addf %25, %24 : vector<2x8x128xf32>
    %27 = arith.mulf %26, %17 : vector<2x8x128xf32>
    %28 = arith.addf %6, %27 : vector<2x8x128xf32>
    %c0_14 = arith.constant 0 : index
    %c0_15 = arith.constant 0 : index
    %29 = vector.load %arg12[%c0_14, %c0_15] : memref<2x128xf32, #tpu.memory_space<vmem>>, vector<2x128xf32>
    %cst_16 = arith.constant dense<0.000000e+00> : vector<2x128xf32>
    %30 = vector.multi_reduction <add>, %28, %cst_16 [1] : vector<2x8x128xf32> to vector<2x128xf32>
    %31 = arith.addf %29, %30 : vector<2x128xf32>
    %c0_17 = arith.constant 0 : index
    %c0_18 = arith.constant 0 : index
    %32 = vector.load %arg12[%c0_17, %c0_18] : memref<2x128xf32, #tpu.memory_space<vmem>>, vector<2x128xf32>
    tpu.vector_store %arg12[%c0_17, %c0_18], %31 {strides = array<i32>} : memref<2x128xf32, #tpu.memory_space<vmem>>, vector<2x128xf32>,
    %c0_19 = arith.constant 0 : index
    %c0_20 = arith.constant 0 : index
    %c0_21 = arith.constant 0 : index
    %33 = vector.load %arg3[%c0_19, %c0_20, %c0_21] : memref<2x8x128xf32, #tpu.memory_space<vmem>>, vector<2x8x128xf32>
    %c0_22 = arith.constant 0 : index
    %c0_23 = arith.constant 0 : index
    %c0_24 = arith.constant 0 : index
    %34 = vector.load %arg4[%c0_22, %c0_23, %c0_24] : memref<2x8x128xf32, #tpu.memory_space<vmem>>, vector<2x8x128xf32>
    %35 = arith.subf %33, %34 : vector<2x8x128xf32>
    %c0_25 = arith.constant 0 : index
    %c0_26 = arith.constant 0 : index
    %36 = vector.load %arg11[%c0_25, %c0_26] : memref<2x128xf32, #tpu.memory_space<vmem>>, vector<2x128xf32>
    %37 = arith.mulf %35, %35 : vector<2x8x128xf32>
    %cst_27 = arith.constant dense<0.000000e+00> : vector<2x128xf32>
    %38 = vector.multi_reduction <add>, %37, %cst_27 [1] : vector<2x8x128xf32> to vector<2x128xf32>
    %39 = arith.addf %36, %38 : vector<2x128xf32>
    %c0_28 = arith.constant 0 : index
    %c0_29 = arith.constant 0 : index
    %40 = vector.load %arg11[%c0_28, %c0_29] : memref<2x128xf32, #tpu.memory_space<vmem>>, vector<2x128xf32>
    tpu.vector_store %arg11[%c0_28, %c0_29], %39 {strides = array<i32>} : memref<2x128xf32, #tpu.memory_space<vmem>>, vector<2x128xf32>,
    %41 = arith.index_cast %arg0 : i32 to index
    %42 = memref.load %arg2[%41] : memref<1xi32, #tpu.memory_space<smem>>
    %c0_i32_30 = arith.constant 0 : i32
    %43 = arith.cmpi ne, %42, %c0_i32_30 : i32
    %44 = arith.extui %43 : i1 to i32
    %c0_i32_31 = arith.constant 0 : i32
    %45 = arith.cmpi ne, %44, %c0_i32_31 : i32
    scf.if %45 {
      %49 = arith.subf %3, %5 : vector<2x8x128xf32>
      %cst_34 = arith.constant 0.00392156886 : f32
      %50 = vector.broadcast %cst_34 : f32 to vector<2x8x128xf32>
      %51 = arith.addf %49, %50 : vector<2x8x128xf32>
      %52 = arith.mulf %16, %51 : vector<2x8x128xf32>
      %cst_35 = arith.constant 4.471500e-02 : f32
      %53 = vector.broadcast %cst_35 : f32 to vector<2x8x128xf32>
      %54 = arith.mulf %53, %52 : vector<2x8x128xf32>
      %55 = arith.mulf %54, %52 : vector<2x8x128xf32>
      %56 = arith.mulf %55, %52 : vector<2x8x128xf32>
      %57 = arith.addf %52, %56 : vector<2x8x128xf32>
      %cst_36 = arith.constant 0.797884583 : f32
      %58 = vector.broadcast %cst_36 : f32 to vector<2x8x128xf32>
      %59 = arith.mulf %58, %57 : vector<2x8x128xf32>
      %60 = math.tanh %59 : vector<2x8x128xf32>
      %cst_37 = arith.constant 1.000000e+00 : f32
      %61 = vector.broadcast %cst_37 : f32 to vector<2x8x128xf32>
      %62 = arith.addf %61, %60 : vector<2x8x128xf32>
      %cst_38 = arith.constant 5.000000e-01 : f32
      %63 = vector.broadcast %cst_38 : f32 to vector<2x8x128xf32>
      %64 = arith.mulf %63, %62 : vector<2x8x128xf32>
      %cst_39 = arith.constant 0.00392156886 : f32
      %65 = vector.broadcast %cst_39 : f32 to vector<2x8x128xf32>
      %66 = arith.subf %49, %65 : vector<2x8x128xf32>
      %67 = arith.mulf %16, %66 : vector<2x8x128xf32>
      %cst_40 = arith.constant 4.471500e-02 : f32
      %68 = vector.broadcast %cst_40 : f32 to vector<2x8x128xf32>
      %69 = arith.mulf %68, %67 : vector<2x8x128xf32>
      %70 = arith.mulf %69, %67 : vector<2x8x128xf32>
      %71 = arith.mulf %70, %67 : vector<2x8x128xf32>
      %72 = arith.addf %67, %71 : vector<2x8x128xf32>
      %cst_41 = arith.constant 0.797884583 : f32
      %73 = vector.broadcast %cst_41 : f32 to vector<2x8x128xf32>
      %74 = arith.mulf %73, %72 : vector<2x8x128xf32>
      %75 = math.tanh %74 : vector<2x8x128xf32>
      %cst_42 = arith.constant 1.000000e+00 : f32
      %76 = vector.broadcast %cst_42 : f32 to vector<2x8x128xf32>
      %77 = arith.addf %76, %75 : vector<2x8x128xf32>
      %cst_43 = arith.constant 5.000000e-01 : f32
      %78 = vector.broadcast %cst_43 : f32 to vector<2x8x128xf32>
      %79 = arith.mulf %78, %77 : vector<2x8x128xf32>
      %cst_44 = arith.constant -9.990000e-01 : f32
      %80 = vector.broadcast %cst_44 : f32 to vector<2x8x128xf32>
      %81 = arith.cmpf olt, %3, %80 : vector<2x8x128xf32>
      %cst_45 = arith.constant 9.990000e-01 : f32
      %82 = vector.broadcast %cst_45 : f32 to vector<2x8x128xf32>
      %83 = arith.cmpf ogt, %3, %82 : vector<2x8x128xf32>
      %cst_46 = arith.constant 1.000000e+00 : f32
      %84 = vector.broadcast %cst_46 : f32 to vector<2x8x128xf32>
      %85 = arith.subf %84, %79 : vector<2x8x128xf32>
      %86 = arith.subf %64, %79 : vector<2x8x128xf32>
      %87 = arith.select %83, %85, %86 : vector<2x8x128xi1>, vector<2x8x128xf32>
      %88 = arith.select %81, %64, %87 : vector<2x8x128xi1>, vector<2x8x128xf32>
      %cst_47 = arith.constant 9.99999996E-13 : f32
      %89 = vector.broadcast %cst_47 : f32 to vector<2x8x128xf32>
      %90 = arith.maximumf %88, %89 : vector<2x8x128xf32>
      %91 = math.log %90 : vector<2x8x128xf32>
      %cst_48 = arith.constant 0.000000e+00 : f32
      %92 = vector.broadcast %cst_48 : f32 to vector<2x8x128xf32>
      %93 = arith.subf %92, %91 : vector<2x8x128xf32>
      %c0_49 = arith.constant 0 : index
      %c0_50 = arith.constant 0 : index
      %94 = vector.load %arg13[%c0_49, %c0_50] : memref<2x128xf32, #tpu.memory_space<vmem>>, vector<2x128xf32>
      %cst_51 = arith.constant dense<0.000000e+00> : vector<2x128xf32>
      %95 = vector.multi_reduction <add>, %93, %cst_51 [1] : vector<2x8x128xf32> to vector<2x128xf32>
      %96 = arith.addf %94, %95 : vector<2x128xf32>
      %c0_52 = arith.constant 0 : index
      %c0_53 = arith.constant 0 : index
      %97 = vector.load %arg13[%c0_52, %c0_53] : memref<2x128xf32, #tpu.memory_space<vmem>>, vector<2x128xf32>
      tpu.vector_store %arg13[%c0_52, %c0_53], %96 {strides = array<i32>} : memref<2x128xf32, #tpu.memory_space<vmem>>, vector<2x128xf32>,
    } else {
    }
    %c0_i32_32 = arith.constant 0 : i32
    %46 = arith.cmpi eq, %arg1, %c0_i32_32 : i32
    %47 = arith.extui %46 : i1 to i32
    %c0_i32_33 = arith.constant 0 : i32
    %48 = arith.cmpi ne, %47, %c0_i32_33 : i32
    scf.if %48 {
      %c0_34 = arith.constant 0 : index
      %c0_35 = arith.constant 0 : index
      %49 = vector.load %arg11[%c0_34, %c0_35] : memref<2x128xf32, #tpu.memory_space<vmem>>, vector<2x128xf32>
      %cst_36 = arith.constant dense<0.000000e+00> : vector<2xf32>
      %50 = vector.multi_reduction <add>, %49, %cst_36 [1] : vector<2x128xf32> to vector<2xf32>
      %51 = vector.shape_cast %50 : vector<2xf32> to vector<2x1xf32>
      %c0_37 = arith.constant 0 : index
      %c0_38 = arith.constant 0 : index
      %52 = vector.load %arg12[%c0_37, %c0_38] : memref<2x128xf32, #tpu.memory_space<vmem>>, vector<2x128xf32>
      %cst_39 = arith.constant dense<0.000000e+00> : vector<2xf32>
      %53 = vector.multi_reduction <add>, %52, %cst_39 [1] : vector<2x128xf32> to vector<2xf32>
      %54 = vector.shape_cast %53 : vector<2xf32> to vector<2x1xf32>
      %55 = vector.extract_strided_slice %7 {offsets = [0, 5], sizes = [2, 1], strides = [1, 1]} : vector<2x128xf32> to vector<2x1xf32>
      %56 = arith.subf %54, %55 : vector<2x1xf32>
      %c0_40 = arith.constant 0 : index
      %c0_41 = arith.constant 0 : index
      %57 = vector.load %arg13[%c0_40, %c0_41] : memref<2x128xf32, #tpu.memory_space<vmem>>, vector<2x128xf32>
      %cst_42 = arith.constant dense<0.000000e+00> : vector<2xf32>
      %58 = vector.multi_reduction <add>, %57, %cst_42 [1] : vector<2x128xf32> to vector<2xf32>
      %59 = vector.shape_cast %58 : vector<2xf32> to vector<2x1xf32>
      %60 = vector.extract_strided_slice %7 {offsets = [0, 6], sizes = [2, 1], strides = [1, 1]} : vector<2x128xf32> to vector<2x1xf32>
      %61 = arith.subf %59, %60 : vector<2x1xf32>
      %62 = vector.extract_strided_slice %7 {offsets = [0, 2], sizes = [2, 1], strides = [1, 1]} : vector<2x128xf32> to vector<2x1xf32>
      %63 = vector.extract_strided_slice %7 {offsets = [0, 4], sizes = [2, 1], strides = [1, 1]} : vector<2x128xf32> to vector<2x1xf32>
      %cst_43 = arith.constant 1.000000e+00 : f32
      %64 = vector.broadcast %cst_43 : f32 to vector<2x1xf32>
      %65 = arith.addf %64, %62 : vector<2x1xf32>
      %cst_44 = arith.constant 1.024000e+03 : f32
      %66 = vector.broadcast %cst_44 : f32 to vector<2x1xf32>
      %67 = arith.mulf %66, %65 : vector<2x1xf32>
      %68 = arith.subf %56, %67 : vector<2x1xf32>
      %cst_45 = arith.constant 5.000000e-01 : f32
      %69 = vector.broadcast %cst_45 : f32 to vector<2x1xf32>
      %70 = arith.mulf %69, %68 : vector<2x1xf32>
      %cst_46 = arith.constant 0.00140888186 : f32
      %71 = vector.broadcast %cst_46 : f32 to vector<2x1xf32>
      %72 = arith.mulf %70, %71 : vector<2x1xf32>
      %cst_47 = arith.constant 0.00140888186 : f32
      %73 = vector.broadcast %cst_47 : f32 to vector<2x1xf32>
      %74 = arith.mulf %61, %73 : vector<2x1xf32>
      %cst_48 = arith.constant 5.000000e-01 : f32
      %75 = vector.broadcast %cst_48 : f32 to vector<2x1xf32>
      %76 = arith.cmpf ogt, %63, %75 : vector<2x1xf32>
      %77 = arith.select %76, %74, %72 : vector<2x1xi1>, vector<2x1xf32>
      %78 = tpu.iota {dimensions = array<i32: 1>} : vector<2x128xi32>
      %c0_i32_49 = arith.constant 0 : i32
      %79 = vector.broadcast %c0_i32_49 : i32 to vector<2x128xi32>
      %80 = arith.cmpi eq, %78, %79 : vector<2x128xi32>
      %c1_i32 = arith.constant 1 : i32
      %81 = vector.broadcast %c1_i32 : i32 to vector<2x128xi32>
      %82 = arith.cmpi eq, %78, %81 : vector<2x128xi32>
      %cst_50 = arith.constant 0.000000e+00 : f32
      %83 = vector.shape_cast %77 : vector<2x1xf32> to vector<2x1xf32>
      %84 = vector.broadcast %83 : vector<2x1xf32> to vector<2x128xf32>
      %85 = vector.broadcast %cst_50 : f32 to vector<2x128xf32>
      %86 = arith.select %82, %84, %85 : vector<2x128xi1>, vector<2x128xf32>
      %87 = vector.shape_cast %51 : vector<2x1xf32> to vector<2x1xf32>
      %88 = vector.broadcast %87 : vector<2x1xf32> to vector<2x128xf32>
      %89 = arith.select %80, %88, %86 : vector<2x128xi1>, vector<2x128xf32>
      %c0_51 = arith.constant 0 : index
      %c0_52 = arith.constant 0 : index
      %90 = vector.load %arg10[%c0_51, %c0_52] : memref<2x128xf32, #tpu.memory_space<vmem>>, vector<2x128xf32>
      tpu.vector_store %arg10[%c0_51, %c0_52], %89 {strides = array<i32>} : memref<2x128xf32, #tpu.memory_space<vmem>>, vector<2x128xf32>,
    } else {
    }
    return
  }
  func.func @transform_0(%arg0: i32, %arg1: i32, %arg2: memref<1xi32, #tpu.memory_space<smem>>) -> (i32, i32, i32) {
    %c0_i32 = arith.constant 0 : i32
    %c0_i32_0 = arith.constant 0 : i32
    return %arg0, %arg1, %c0_i32 : i32, i32, i32
  }
  func.func @transform_1(%arg0: i32, %arg1: i32, %arg2: memref<1xi32, #tpu.memory_space<smem>>) -> (i32, i32, i32) {
    %c0_i32 = arith.constant 0 : i32
    %c0_i32_0 = arith.constant 0 : i32
    return %arg0, %arg1, %c0_i32 : i32, i32, i32
  }
  func.func @transform_2(%arg0: i32, %arg1: i32, %arg2: memref<1xi32, #tpu.memory_space<smem>>) -> (i32, i32, i32) {
    %c0_i32 = arith.constant 0 : i32
    %c0_i32_0 = arith.constant 0 : i32
    return %arg0, %arg1, %c0_i32 : i32, i32, i32
  }
  func.func @transform_3(%arg0: i32, %arg1: i32, %arg2: memref<1xi32, #tpu.memory_space<smem>>) -> (i32, i32, i32) {
    %c0_i32 = arith.constant 0 : i32
    %c0_i32_0 = arith.constant 0 : i32
    return %arg0, %arg1, %c0_i32 : i32, i32, i32
  }
  func.func @transform_4(%arg0: i32, %arg1: i32, %arg2: memref<1xi32, #tpu.memory_space<smem>>) -> (i32, i32, i32) {
    %c0_i32 = arith.constant 0 : i32
    %c0_i32_0 = arith.constant 0 : i32
    return %arg0, %arg1, %c0_i32 : i32, i32, i32
  }
  func.func @transform_5(%arg0: i32, %arg1: i32, %arg2: memref<1xi32, #tpu.memory_space<smem>>) -> (i32, i32, i32) {
    %c0_i32 = arith.constant 0 : i32
    %c0_i32_0 = arith.constant 0 : i32
    return %arg0, %arg1, %c0_i32 : i32, i32, i32
  }
  func.func @transform_6(%arg0: i32, %arg1: i32, %arg2: memref<1xi32, #tpu.memory_space<smem>>) -> (i32, i32) {
    %c0_i32 = arith.constant 0 : i32
    %c0_i32_0 = arith.constant 0 : i32
    return %arg0, %c0_i32 : i32, i32
  }
  func.func @transform_7(%arg0: i32, %arg1: i32, %arg2: memref<1xi32, #tpu.memory_space<smem>>) -> (i32, i32) {
    %c0_i32 = arith.constant 0 : i32
    %c0_i32_0 = arith.constant 0 : i32
    return %arg0, %c0_i32 : i32, i32
  }
}

</mosaic_0001>

<llo_original>
// kernel: diffusion_hybrid_loss.1
$region0: #{diffusion_hybrid_loss.1}
  #allocation0 [shape = 'u32[]', space=smem, size = 0x4, offset = 0x4, fixed_abs, tag = 'smem constant byte address 0x4 - core index']
  #allocation1 [shape = 'u32[144,128]{1,0:T(1,128)}', space=vmem, size = 0x12000, scoped, tag = 'internal scratch']
  #allocation2 [shape = 'f32[2,128]{1,0:T(2,128)}', space=vmem, size = 0x400, scoped, tag = 'scratch operand']
  #allocation3 [shape = 'f32[2,128]{1,0:T(2,128)}', space=vmem, size = 0x400, scoped, tag = 'scratch operand']
  #allocation4 [shape = 'f32[2,128]{1,0:T(2,128)}', space=vmem, size = 0x400, scoped, tag = 'scratch operand']
  #allocation5 [shape = 's32[1]{0}', space=sflag, size = 0x4, scoped, tag = 'scoped memory for diffusion_hybrid_loss.1']
  #allocation6 [shape = 's32[1]{0:T(128)S(6)}', space=smem, size = 0x200, scoped, tag = 'prefetched SMEM operand 0']
  %s0 = inlined_call_operand.<no memory space> [shape: s32[1], index: 0, kind: input, shape index: {}]
  %s1 = inlined_call_operand.vmem [shape: f32[2,8,128], index: 1, kind: input, shape index: {}]
  %s2 = inlined_call_operand.vmem [shape: f32[2,8,128], index: 2, kind: input, shape index: {}]
  %s3 = inlined_call_operand.vmem [shape: f32[2,8,128], index: 3, kind: input, shape index: {}]
  %s4 = inlined_call_operand.vmem [shape: f32[2,8,128], index: 4, kind: input, shape index: {}]
  %s5 = inlined_call_operand.vmem [shape: f32[2,8,128], index: 5, kind: input, shape index: {}]
  %s6 = inlined_call_operand.vmem [shape: f32[2,8,128], index: 6, kind: input, shape index: {}]
  %s7 = inlined_call_operand.vmem [shape: f32[2,128], index: 7, kind: input, shape index: {}]
  %s8 = inlined_call_operand.vmem [shape: f32[2,128], index: 8, kind: output, shape index: {}]
  %s9 = sld [smem:[#allocation0]]
  $region50: #{diffusion_hybrid_loss.1} parent=0
    _
  %s11 = ssub.s32 1, %s9
  %s12 = scalar_select 0, %s11, %s9
  %13 = sst [smem:[#allocation6]] %s0
  // Predicated region
  $region2: #{diffusion_hybrid_loss.1} parent=0 // pred_check
    _
  $region3: #{diffusion_hybrid_loss.1} parent=0 // pred_check_branch
    %15 = sbr.rel (0) target = $region5
  $region4: #{diffusion_hybrid_loss.1} parent=0 // pred_region
    _
  $region5: #{diffusion_hybrid_loss.1} parent=0 // pred_fallthru
    _
  // Predicated region
  $region6: #{diffusion_hybrid_loss.1} parent=0 // pred_check
    _
  $region7: #{diffusion_hybrid_loss.1} parent=0 // pred_check_branch
    %17 = sbr.rel (0) target = $region9
  $region8: #{diffusion_hybrid_loss.1} parent=0 // pred_region
    _
  $region9: #{diffusion_hybrid_loss.1} parent=0 // pred_fallthru
    _
  // Predicated region
  $region10: #{diffusion_hybrid_loss.1} parent=0 // pred_check
    _
  $region11: #{diffusion_hybrid_loss.1} parent=0 // pred_check_branch
    %19 = sbr.rel (0) target = $region13
  $region12: #{diffusion_hybrid_loss.1} parent=0 // pred_region
    _
  $region13: #{diffusion_hybrid_loss.1} parent=0 // pred_fallthru
    _
  // Predicated region
  $region14: #{diffusion_hybrid_loss.1} parent=0 // pred_check
    _
  $region15: #{diffusion_hybrid_loss.1} parent=0 // pred_check_branch
    %21 = sbr.rel (0) target = $region17
  $region16: #{diffusion_hybrid_loss.1} parent=0 // pred_region
    _
  $region17: #{diffusion_hybrid_loss.1} parent=0 // pred_fallthru
    _
  // Predicated region
  $region18: #{diffusion_hybrid_loss.1} parent=0 // pred_check
    _
  $region19: #{diffusion_hybrid_loss.1} parent=0 // pred_check_branch
    %23 = sbr.rel (0) target = $region21
  $region20: #{diffusion_hybrid_loss.1} parent=0 // pred_region
    _
  $region21: #{diffusion_hybrid_loss.1} parent=0 // pred_fallthru
    _
  // Predicated region
  $region22: #{diffusion_hybrid_loss.1} parent=0 // pred_check
    _
  $region23: #{diffusion_hybrid_loss.1} parent=0 // pred_check_branch
    %25 = sbr.rel (0) target = $region25
  $region24: #{diffusion_hybrid_loss.1} parent=0 // pred_region
    _
  $region25: #{diffusion_hybrid_loss.1} parent=0 // pred_fallthru
    _
  // Predicated region
  $region26: #{diffusion_hybrid_loss.1} parent=0 // pred_check
    _
  $region27: #{diffusion_hybrid_loss.1} parent=0 // pred_check_branch
    %27 = sbr.rel (0) target = $region29
  $region28: #{diffusion_hybrid_loss.1} parent=0 // pred_region
    _
  $region29: #{diffusion_hybrid_loss.1} parent=0 // pred_fallthru
    _
  %p28 = scmp.eq.s32.totalorder 0, 0
  // Predicated region
  $region30: #{diffusion_hybrid_loss.1} parent=0 // pred_check
    %p29 = pneg %p28
  $region31: #{diffusion_hybrid_loss.1} parent=0 // pred_check_branch
    %31 = sbr.rel (%p29) target = $region33
  $region32: #{diffusion_hybrid_loss.1} parent=0 // pred_region
    %32 = vst [vmem:[#allocation2] sm:$0x3] 0.0
    %33 = vst [vmem:[#allocation3] sm:$0x3] 0.0
    %34 = vst [vmem:[#allocation4] sm:$0x3] 0.0
  $region33: #{diffusion_hybrid_loss.1} parent=0 // pred_fallthru
    _
  %v35 = vld [vmem:[%s5] sm:$0xff]
  %v36 = vld [vmem:[%s5 + $0x8] sm:$0xff]
  %v37 = vld [vmem:[%s6] sm:$0xff]
  %v38 = vld [vmem:[%s6 + $0x8] sm:$0xff]
  %v39 = vld [vmem:[%s3] sm:$0xff]
  %v40 = vld [vmem:[%s3 + $0x8] sm:$0xff]
  %v41 = vld [vmem:[%s4] sm:$0xff]
  %v42 = vld [vmem:[%s4 + $0x8] sm:$0xff]
  %v43 = vld [vmem:[%s7] sm:$0x3]
  %v46 = vunpack.c.l.s4 1966171168
  %v47 = vunpack.c.0.s8 %v46
  %v48 = vlaneseq
  %v49 = vshrl.u32 %v48, 7
  %v50 = vsub.s32 %v47, %v49
  %v51 = vrot.slane %v43, %v50
  %v52 = vcombine.high %v51, %v51
  %v54 = vunpack.c.l.s4 1966171168
  %v55 = vunpack.c.0.s8 %v54
  %v56 = vlaneseq
  %v57 = vshrl.u32 %v56, 7
  %v58 = vsub.s32 %v55, %v57
  %v59 = vrot.slane %v51, %v58
  %v61 = vunpack.c.l.s4 1966171168
  %v62 = vunpack.c.0.s8 %v61
  %v63 = vlaneseq
  %v64 = vshrl.u32 %v63, 7
  %v65 = vsub.s32 %v62, %v64
  %v66 = vrot.slane %v52, %v65
  %v67 = vmul.f32 %v41, -0.5
  %v68 = vmul.f32 %v42, -0.5
  %v69 = vmul.f32 %v67, 1.442695
  %v70 = vpow.pop %v69
  %v71 = vmul.f32 %v68, 1.442695
  %v72 = vpow.pop %v71
  %v73 = vmul.f32 %v70, %v70
  %v74 = vmul.f32 %v72, %v72
  %v75 = vlaneseq
  %v76 = vshrl.u32 %v75, 7
  %v77 = vsub.s32 0, %v76
  %v78 = vrot.slane %v59, %v77
  %v79 = vlaneseq
  %v80 = vshrl.u32 %v79, 7
  %v81 = vsub.s32 0, %v80
  %v82 = vrot.slane %v66, %v81
  %83 = vset.pattern.permute.xlu0 0
  %84 = vperm.xlu0 %83, %v78
  %v85 = vpop.permute.xlu0 %84
  %87 = vset.pattern.permute.xlu0 0
  %88 = vperm.xlu0 %87, %v82
  %v89 = vpop.permute.xlu0 %88
  %v91 = vmul.f32 %v85, %v35
  %v92 = vmul.f32 %v89, %v36
  %93 = vset.pattern.permute.xlu0 1
  %94 = vperm.xlu0 %93, %v78
  %v95 = vpop.permute.xlu0 %94
  %97 = vset.pattern.permute.xlu0 1
  %98 = vperm.xlu0 %97, %v82
  %v99 = vpop.permute.xlu0 %98
  %v101 = vmul.f32 %v95, %v37
  %v102 = vmul.f32 %v99, %v38
  %v103 = vadd.f32 %v91, %v101
  %v104 = vadd.f32 %v92, %v102
  %v105 = vsub.f32 %v103, %v39
  %v106 = vsub.f32 %v104, %v40
  %v107 = vmul.f32 %v105, %v105
  %v108 = vmul.f32 %v106, %v106
  %109 = vset.pattern.permute.xlu0 3
  %110 = vperm.xlu0 %109, %v78
  %v111 = vpop.permute.xlu0 %110
  %113 = vset.pattern.permute.xlu0 3
  %114 = vperm.xlu0 %113, %v82
  %v115 = vpop.permute.xlu0 %114
  %v117 = vadd.f32 %v111, %v107
  %v118 = vadd.f32 %v115, %v108
  %v119 = vmul.f32 %v117, %v73
  %v120 = vmul.f32 %v118, %v74
  %v121 = vadd.f32 %v41, %v119
  %v122 = vadd.f32 %v42, %v120
  %v123 = vld [vmem:[#allocation3] sm:$0x3]
  %v124 = vrot.slane %v121, 4
  %v125 = vadd.f32 %v121, %v124
  %v126 = vrot.slane %v125, 2
  %v127 = vadd.f32 %v125, %v126
  %v128 = vrot.slane %v127, 1
  %v129 = vadd.f32 %v127, %v128
  %v130 = vrot.slane %v122, 4
  %v131 = vadd.f32 %v122, %v130
  %v132 = vrot.slane %v131, 2
  %v133 = vadd.f32 %v131, %v132
  %v134 = vrot.slane %v133, 1
  %v135 = vadd.f32 %v133, %v134
  %vm138 = vcmask 1041409
  %v139 = vsel %vm138, %v135, %v129
  %v141 = vadd.f32 %v123, %v139
  %142 = vst [vmem:[#allocation3] sm:$0x3] %v141
  %v143 = vld [vmem:[%s1] sm:$0xff]
  %v144 = vld [vmem:[%s1 + $0x8] sm:$0xff]
  %v145 = vld [vmem:[%s2] sm:$0xff]
  %v146 = vld [vmem:[%s2 + $0x8] sm:$0xff]
  %v147 = vsub.f32 %v143, %v145
  %v148 = vsub.f32 %v144, %v146
  %v149 = vld [vmem:[#allocation2] sm:$0x3]
  %v150 = vmul.f32 %v147, %v147
  %v151 = vmul.f32 %v148, %v148
  %v152 = vrot.slane %v150, 4
  %v153 = vadd.f32 %v150, %v152
  %v154 = vrot.slane %v153, 2
  %v155 = vadd.f32 %v153, %v154
  %v156 = vrot.slane %v155, 1
  %v157 = vadd.f32 %v155, %v156
  %v158 = vrot.slane %v151, 4
  %v159 = vadd.f32 %v151, %v158
  %v160 = vrot.slane %v159, 2
  %v161 = vadd.f32 %v159, %v160
  %v162 = vrot.slane %v161, 1
  %v163 = vadd.f32 %v161, %v162
  %v166 = vsel %vm138, %v163, %v157
  %v168 = vadd.f32 %v149, %v166
  %169 = vst [vmem:[#allocation2] sm:$0x3] %v168
  %s170 = sld [smem:[#allocation6]]
  %p171 = scmp.ne.s32.totalorder %s170, 0
  // Predicated region
  $region34: #{diffusion_hybrid_loss.1} parent=0 // pred_check
    %p172 = pneg %p171
  $region35: #{diffusion_hybrid_loss.1} parent=0 // pred_check_branch
    %174 = sbr.rel (%p172) target = $region37
  $region36: #{diffusion_hybrid_loss.1} parent=0 // pred_region
    %v175 = vsub.f32 %v35, %v39
    %v176 = vsub.f32 %v36, %v40
    %v177 = vadd.f32 %v175, 0.003921569
    %v178 = vadd.f32 %v176, 0.003921569
    %v179 = vmul.f32 %v70, %v177
    %v180 = vmul.f32 %v72, %v178
    %v181 = vmul.f32 %v179, 0.044715
    %v182 = vmul.f32 %v180, 0.044715
    %v183 = vmul.f32 %v181, %v179
    %v184 = vmul.f32 %v182, %v180
    %v185 = vmul.f32 %v183, %v179
    %v186 = vmul.f32 %v184, %v180
    %v187 = vadd.f32 %v179, %v185
    %v188 = vadd.f32 %v180, %v186
    %v189 = vmul.f32 %v187, 0.7978846
    %v190 = vmul.f32 %v188, 0.7978846
    %v191 = vtanh.pop %v189
    %v192 = vtanh.pop %v190
    %v193 = vadd.f32 %v191, 1.0
    %v194 = vadd.f32 %v192, 1.0
    %v195 = vmul.f32 %v193, 0.5
    %v196 = vmul.f32 %v194, 0.5
    %v197 = vsub.f32 %v175, 0.003921569
    %v198 = vsub.f32 %v176, 0.003921569
    %v199 = vmul.f32 %v70, %v197
    %v200 = vmul.f32 %v72, %v198
    %v201 = vmul.f32 %v199, 0.044715
    %v202 = vmul.f32 %v200, 0.044715
    %v203 = vmul.f32 %v201, %v199
    %v204 = vmul.f32 %v202, %v200
    %v205 = vmul.f32 %v203, %v199
    %v206 = vmul.f32 %v204, %v200
    %v207 = vadd.f32 %v199, %v205
    %v208 = vadd.f32 %v200, %v206
    %v209 = vmul.f32 %v207, 0.7978846
    %v210 = vmul.f32 %v208, 0.7978846
    %v211 = vtanh.pop %v209
    %v212 = vtanh.pop %v210
    %v213 = vadd.f32 %v211, 1.0
    %v214 = vadd.f32 %v212, 1.0
    %v215 = vmul.f32 %v213, 0.5
    %v216 = vmul.f32 %v214, 0.5
    %vm217 = vcmp.lt.f32.partialorder %v35, -0.999
    %vm218 = vcmp.lt.f32.partialorder %v36, -0.999
    %vm219 = vcmp.gt.f32.partialorder %v35, 0.999
    %vm220 = vcmp.gt.f32.partialorder %v36, 0.999
    %v221 = vsub.f32 1.0, %v215
    %v222 = vsub.f32 1.0, %v216
    %v223 = vsub.f32 %v195, %v215
    %v224 = vsub.f32 %v196, %v216
    %v225 = vsel %vm219, %v221, %v223
    %v226 = vsel %vm220, %v222, %v224
    %v227 = vsel %vm217, %v195, %v225
    %v228 = vsel %vm218, %v196, %v226
    %v229 = vmax.f32 %v227, 1e-12
    %v230 = vmax.f32 %v228, 1e-12
    %v231 = vlog2.pop %v229
    %v232 = vmul.f32 %v231, 0.6931472
    %v233 = vlog2.pop %v230
    %v234 = vmul.f32 %v233, 0.6931472
    %v235 = vsub.f32 0.0, %v232
    %v236 = vsub.f32 0.0, %v234
    %v237 = vld [vmem:[#allocation4] sm:$0x3]
    %v238 = vrot.slane %v235, 4
    %v239 = vadd.f32 %v235, %v238
    %v240 = vrot.slane %v239, 2
    %v241 = vadd.f32 %v239, %v240
    %v242 = vrot.slane %v241, 1
    %v243 = vadd.f32 %v241, %v242
    %v244 = vrot.slane %v236, 4
    %v245 = vadd.f32 %v236, %v244
    %v246 = vrot.slane %v245, 2
    %v247 = vadd.f32 %v245, %v246
    %v248 = vrot.slane %v247, 1
    %v249 = vadd.f32 %v247, %v248
    %v252 = vsel %vm138, %v249, %v243
    %v254 = vadd.f32 %v237, %v252
    %255 = vst [vmem:[#allocation4] sm:$0x3] %v254
  $region37: #{diffusion_hybrid_loss.1} parent=0 // pred_fallthru
    _
  // Predicated region
  $region38: #{diffusion_hybrid_loss.1} parent=0 // pred_check
    %p256 = pneg %p28
  $region39: #{diffusion_hybrid_loss.1} parent=0 // pred_check_branch
    %258 = sbr.rel (%p256) target = $region41
  $region40: #{diffusion_hybrid_loss.1} parent=0 // pred_region
    %v259 = vld [vmem:[#allocation2] sm:$0x3]
    %vm260 = vcmask 1041408
    %v261 = vsel %vm260, %v259, 0.0
    %262 = vadd.xlane.f32.xlu0 %v261
    %v263 = vpop.xlane.xlu0 %262
    %v264 = vld [vmem:[#allocation3] sm:$0x3]
    %v265 = vsel %vm260, %v264, 0.0
    %266 = vadd.xlane.f32.xlu0 %v265
    %v267 = vpop.xlane.xlu0 %266
    %v268 = vsub.f32 %v267, %v43
    %v269 = vld [vmem:[#allocation4] sm:$0x3]
    %v270 = vsel %vm260, %v269, 0.0
    %271 = vadd.xlane.f32.xlu0 %v270
    %v272 = vpop.xlane.xlu0 %271
    %v273 = vsub.f32 %v272, %v43
    %v274 = vadd.f32 %v43, 1.0
    %v275 = vmul.f32 %v274, 1024.0
    %277 = vrot.lane.b32.xlu0 %v275, 3
    %v278 = vpop.permute.xlu0 %277
    %v280 = vsub.f32 %v268, %v278
    %v281 = vmul.f32 %v280, 0.5
    %v282 = vmul.f32 %v281, 0.0014088819
    %v283 = vmul.f32 %v273, 0.0014088819
    %vm284 = vcmp.gt.f32.partialorder %v43, 0.5
    %286 = vrot.lane.b32.xlu0 %v283, 126
    %v287 = vpop.permute.xlu0 %286
    %290 = vrot.lane.b32.xlu0 %v282, 127
    %v291 = vpop.permute.xlu0 %290
    %v293 = vsel %vm284, %v287, %v291
    %v294 = vlaneseq
    %v295 = vand.u32 %v294, 127
    %vm296 = vcmp.eq.s32.totalorder %v295, 0
    %vm297 = vcmp.eq.s32.totalorder %v295, 1
    %299 = vset.pattern.permute.xlu0 4
    %300 = vperm.xlu0 %299, %v293
    %v301 = vpop.permute.xlu0 %300
    %v303 = vsel %vm297, %v301, 0.0
    %v304 = vsel %vm296, %v263, %v303
    %305 = vst [vmem:[%s8] sm:$0x3] %v304
  $region41: #{diffusion_hybrid_loss.1} parent=0 // pred_fallthru
    _
  // Predicated region
  $region42: #{diffusion_hybrid_loss.1} parent=0 // pred_check
    _
  $region43: #{diffusion_hybrid_loss.1} parent=0 // pred_check_branch
    %307 = sbr.rel (0) target = $region45
  $region44: #{diffusion_hybrid_loss.1} parent=0 // pred_region
    _
  $region45: #{diffusion_hybrid_loss.1} parent=0 // pred_fallthru
    _
  // Predicated region
  $region46: #{diffusion_hybrid_loss.1} parent=0 // pred_check
    _
  $region47: #{diffusion_hybrid_loss.1} parent=0 // pred_check_branch
    %309 = sbr.rel (0) target = $region49
  $region48: #{diffusion_hybrid_loss.1} parent=0 // pred_region
    _
  $region49: #{diffusion_hybrid_loss.1} parent=0 // pred_fallthru
    _

</llo_original>
